<compile_context>
chip_gen: v5e
topology: v5e:2x2
jax: 0.10.0
libtpu: 0.0.40
codegen_flags: <defaults>
</compile_context>

<pallas_src>
import jax
import jax.numpy as jnp
from jax.experimental import pallas as pl
from jax.experimental.pallas import tpu as pltpu


def _quant_conv_kernel(scales_ref, w_ref, p_ref, b_ref, o_ref):
    """scales_ref: SMEM (3,) = [s_in*s_w, 1/s_out, s_out].
    w_ref: (OC, K)  bf16 weight codes (resident across the grid).
    p_ref: (K, tm)  bf16 activation codes tile (pipelined).
    b_ref: (OC, 1)  f32 dequantized bias (resident).
    o_ref: (OC, tm) f32 dequantized output tile (lane-dense along M)."""
    s_acc = scales_ref[0]      # s_in * s_w
    inv_s_out = scales_ref[1]
    s_out = scales_ref[2]

    # MXU matmul on bf16 integer codes with exact f32 accumulation.
    acc = jnp.dot(w_ref[...], p_ref[...], preferred_element_type=jnp.float32)

    # Dequantize once with the combined scale, add the (already int32-quantized) bias.
    acc = acc * s_acc + b_ref[...]

    # int8 per-tensor output fake-quant (round-half-to-even like torch.round).
    o_ref[...] = jnp.clip(jnp.round(acc * inv_s_out), -128.0, 127.0) * s_out


def quant_conv_net(x, weight, bias, *, out_scale=None, tm=1024):
    """x: (N, C, H, W) float32 NCHW.  weight: (OC, C, KH, KW).  bias: (OC,).
    Returns (N, OC, H, W) float32 (the dequantized value of the output QuantTensor)."""
    assert tm % 128 == 0, "tm must be lane-aligned"
    N, C, H, W = x.shape
    OC, _, KH, KW = weight.shape
    K = C * KH * KW
    M = N * H * W

    # ---- deterministic per-tensor scales (Brevitas-style stats init) ----
    s_in = jnp.maximum(jnp.max(jnp.abs(x)) / 127.0, 1e-12)
    s_w = jnp.maximum(jnp.max(jnp.abs(weight)) / 7.0, 1e-12)   # 4-bit narrow range
    s_acc = s_in * s_w

    # ---- weight / bias / activation fake-quant hoisted out of the kernel ----
    w_codes = jnp.clip(jnp.round(weight / s_w), -7.0, 7.0)       # f32 integer codes
    b_deq = jnp.round(bias / s_acc) * s_acc                      # Int32Bias, dequantized
    x_codes = jnp.clip(jnp.round(x / s_in), -128.0, 127.0)       # int8 codes (exact in bf16)

    # ---- output activation scale ----
    # Brevitas' Int8ActPerTensorFloat derives its scale from observed output statistics.
    # If no pre-calibrated scale is supplied, run a one-time XLA calibration pass on the
    # current batch (mimics the runtime-stats init of the first forward).  Not in the
    # steady-state hot path, where a fixed `out_scale` is passed in.
    if out_scale is None:
        y_cal = jax.lax.conv_general_dilated(
            x_codes * s_in, w_codes * s_w, window_strides=(1, 1), padding="SAME",
            dimension_numbers=("NCHW", "OIHW", "NCHW"))
        y_cal = y_cal + b_deq.reshape(1, OC, 1, 1)
        out_scale = jnp.maximum(jnp.max(jnp.abs(y_cal)) / 127.0, 1e-12)
    s_out = out_scale

    # ---- transposed im2col on the bf16 codes (padding=1, stride=1, 'same'): (K, M) ----
    xp = jnp.pad(x_codes.astype(jnp.bfloat16), ((0, 0), (0, 0), (1, 1), (1, 1)))
    cols = [xp[:, :, i:i + H, j:j + W] for i in range(KH) for j in range(KW)]  # (N,C,H,W) each
    # (KH*KW, N, C, H, W) -> (C, KH*KW, N, H, W) -> (K, M): row=(c,kh,kw), col=(n,h,w)
    patches_t = jnp.stack(cols, axis=0).transpose(2, 0, 1, 3, 4).reshape(K, M)

    # ---- pad M (lane axis) to the tile size; K left at 36 on purpose ----
    m_tiles = pl.cdiv(M, tm)
    m_pad = m_tiles * tm
    patches_t = jnp.pad(patches_t, ((0, 0), (0, m_pad - M)))

    w2 = w_codes.reshape(OC, K).astype(jnp.bfloat16)             # (OC, K) codes, col=(c,kh,kw)
    b2 = b_deq.reshape(OC, 1).astype(jnp.float32)                # broadcast along lanes
    scales = jnp.stack([s_acc, 1.0 / s_out, s_out]).astype(jnp.float32)

    out = pl.pallas_call(
        _quant_conv_kernel,
        out_shape=jax.ShapeDtypeStruct((OC, m_pad), jnp.float32),
        grid_spec=pltpu.PrefetchScalarGridSpec(
            num_scalar_prefetch=0,
            grid=(m_tiles,),
            in_specs=[
                pl.BlockSpec(memory_space=pltpu.MemorySpace.SMEM),   # scales (3,)
                pl.BlockSpec((OC, K), lambda i: (0, 0)),             # weight codes (resident)
                pl.BlockSpec((K, tm), lambda i: (0, i)),             # patch codes (pipelined)
                pl.BlockSpec((OC, 1), lambda i: (0, 0)),             # bias column (resident)
            ],
            out_specs=pl.BlockSpec((OC, tm), lambda i: (0, i)),
        ),
        compiler_params=pltpu.CompilerParams(
            dimension_semantics=("parallel",),
        ),
    )(scales, w2, patches_t, b2)

    # slice off M padding and return NCHW
    return out[:, :M].reshape(OC, N, H, W).transpose(1, 0, 2, 3)


if __name__ == "__main__":
    # small shapes consistent with the module: in_channels=4, 16 output channels, 3x3, pad=1
    N, C, H, W = 2, 4, 16, 16
    OC, KS = 16, 3

    key = jax.random.PRNGKey(0)
    kx, kw, kb = jax.random.split(key, 3)

    x = jax.random.normal(kx, (N, C, H, W), dtype=jnp.float32)
    # deterministic kaiming-uniform-style init (matches nn.Conv2d default bounds)
    fan_in = C * KS * KS
    bound = 1.0 / (fan_in ** 0.5)
    weight = jax.random.uniform(kw, (OC, C, KS, KS), jnp.float32, -bound, bound)
    bias = jax.random.uniform(kb, (OC,), jnp.float32, -bound, bound)

    y = quant_conv_net(x, weight, bias, tm=256)   # M = 512 -> grid=(2,) at these shapes
    jax.block_until_ready(y)
    assert y.shape == (N, OC, H, W) and y.dtype == jnp.float32

    # plain-JAX reference of the same fake-quant pipeline (sanity check of the kernel)
    s_in = jnp.max(jnp.abs(x)) / 127.0
    s_w = jnp.max(jnp.abs(weight)) / 7.0
    xq = jnp.clip(jnp.round(x / s_in), -128.0, 127.0) * s_in
    wq = jnp.clip(jnp.round(weight / s_w), -7.0, 7.0) * s_w
    bq = jnp.round(bias / (s_in * s_w)) * (s_in * s_w)
    yf = jax.lax.conv_general_dilated(
        xq, wq, (1, 1), "SAME", dimension_numbers=("NCHW", "OIHW", "NCHW")
    ) + bq.reshape(1, OC, 1, 1)
    s_out = jnp.max(jnp.abs(yf)) / 127.0
    y_ref = jnp.clip(jnp.round(yf / s_out), -128.0, 127.0) * s_out
    assert jnp.allclose(y, y_ref, atol=float(2.0 * s_out), rtol=0.0), "mismatch vs XLA reference"

    print("KERNEL_OK")
</pallas_src>

<mosaic_0001>
module attributes {stable_mosaic.version = 11 : i64} {
  func.func @_quant_conv_kernel(%arg0: i32, %arg1: memref<3xf32, #tpu.memory_space<smem>>, %arg2: memref<16x36xbf16, #tpu.memory_space<vmem>>, %arg3: memref<36x256xbf16, #tpu.memory_space<vmem>>, %arg4: memref<16x1xf32, #tpu.memory_space<vmem>>, %arg5: memref<16x256xf32, #tpu.memory_space<vmem>>) attributes {dimension_semantics = [#tpu.dimension_semantics<parallel>], iteration_bounds = array<i64: 2>, scalar_prefetch = 0 : i64, scratch_operands = 0 : i64, tpu.core_type = #tpu.core_type<tc>, window_params = [{transform_indices = @transform_0, window_bounds = array<i64: 3>}, {pipeline_mode = #tpu.pipeline_mode<synchronous>, transform_indices = @transform_1, window_bounds = array<i64: 16, 36>}, {transform_indices = @transform_2, window_bounds = array<i64: 36, 256>}, {pipeline_mode = #tpu.pipeline_mode<synchronous>, transform_indices = @transform_3, window_bounds = array<i64: 16, 1>}, {transform_indices = @transform_4, window_bounds = array<i64: 16, 256>}]} {
    %c0 = arith.constant 0 : index
    %0 = memref.load %arg1[%c0] : memref<3xf32, #tpu.memory_space<smem>>
    %c1 = arith.constant 1 : index
    %1 = memref.load %arg1[%c1] : memref<3xf32, #tpu.memory_space<smem>>
    %c2 = arith.constant 2 : index
    %2 = memref.load %arg1[%c2] : memref<3xf32, #tpu.memory_space<smem>>
    %c0_0 = arith.constant 0 : index
    %c0_1 = arith.constant 0 : index
    %3 = vector.load %arg2[%c0_0, %c0_1] : memref<16x36xbf16, #tpu.memory_space<vmem>>, vector<16x36xbf16>
    %c0_2 = arith.constant 0 : index
    %c0_3 = arith.constant 0 : index
    %4 = vector.load %arg3[%c0_2, %c0_3] : memref<36x256xbf16, #tpu.memory_space<vmem>>, vector<36x256xbf16>
    %cst = arith.constant dense<0.000000e+00> : vector<16x256xf32>
    %5 = tpu.matmul %3, %4, %cst {dimension_numbers = #tpu.dot_dimension_numbers<[1], [0], [0], [1], [0, 0, 1, 1], [], []>} : vector<16x36xbf16>, vector<36x256xbf16>, vector<16x256xf32> -> vector<16x256xf32>
    %6 = vector.broadcast %0 : f32 to vector<16x256xf32>
    %7 = arith.mulf %5, %6 : vector<16x256xf32>
    %c0_4 = arith.constant 0 : index
    %c0_5 = arith.constant 0 : index
    %8 = vector.load %arg4[%c0_4, %c0_5] : memref<16x1xf32, #tpu.memory_space<vmem>>, vector<16x1xf32>
    %9 = vector.broadcast %8 : vector<16x1xf32> to vector<16x256xf32>
    %10 = arith.addf %7, %9 : vector<16x256xf32>
    %11 = vector.broadcast %1 : f32 to vector<16x256xf32>
    %12 = arith.mulf %10, %11 : vector<16x256xf32>
    %13 = math.roundeven %12 : vector<16x256xf32>
    %cst_6 = arith.constant -1.280000e+02 : f32
    %cst_7 = arith.constant 1.270000e+02 : f32
    %14 = vector.broadcast %cst_6 : f32 to vector<16x256xf32>
    %15 = arith.maximumf %14, %13 : vector<16x256xf32>
    %16 = vector.broadcast %cst_7 : f32 to vector<16x256xf32>
    %17 = arith.minimumf %16, %15 : vector<16x256xf32>
    %18 = vector.broadcast %2 : f32 to vector<16x256xf32>
    %19 = arith.mulf %17, %18 : vector<16x256xf32>
    %c0_8 = arith.constant 0 : index
    %c0_9 = arith.constant 0 : index
    %20 = vector.load %arg5[%c0_8, %c0_9] : memref<16x256xf32, #tpu.memory_space<vmem>>, vector<16x256xf32>
    tpu.vector_store %arg5[%c0_8, %c0_9], %19 {strides = array<i32>} : memref<16x256xf32, #tpu.memory_space<vmem>>, vector<16x256xf32>,
    return
  }
  func.func @transform_0(%arg0: i32) -> i32 {
    %c0_i32 = arith.constant 0 : i32
    %c0_i32_0 = arith.constant 0 : i32
    return %c0_i32 : i32
  }
  func.func @transform_1(%arg0: i32) -> (i32, i32) {
    %c0_i32 = arith.constant 0 : i32
    %c0_i32_0 = arith.constant 0 : i32
    %c0_i32_1 = arith.constant 0 : i32
    return %c0_i32, %c0_i32_0 : i32, i32
  }
  func.func @transform_2(%arg0: i32) -> (i32, i32) {
    %c0_i32 = arith.constant 0 : i32
    %c0_i32_0 = arith.constant 0 : i32
    return %c0_i32, %arg0 : i32, i32
  }
  func.func @transform_3(%arg0: i32) -> (i32, i32) {
    %c0_i32 = arith.constant 0 : i32
    %c0_i32_0 = arith.constant 0 : i32
    %c0_i32_1 = arith.constant 0 : i32
    return %c0_i32, %c0_i32_0 : i32, i32
  }
  func.func @transform_4(%arg0: i32) -> (i32, i32) {
    %c0_i32 = arith.constant 0 : i32
    %c0_i32_0 = arith.constant 0 : i32
    return %c0_i32, %arg0 : i32, i32
  }
}

</mosaic_0001>

<llo_original>
// kernel: tpu_custom_call.1
$region0: #{tpu_custom_call.1}
  #allocation0 [shape = 'u32[]', space=smem, size = 0x4, offset = 0x4, fixed_abs, tag = 'smem constant byte address 0x4 - core index']
  #allocation1 [shape = 'u32[72,128]{1,0:T(1,128)}', space=vmem, size = 0x9000, scoped, tag = 'internal scratch']
  %s0 = inlined_call_operand.vmem [shape: f32[3], index: 0, kind: input, shape index: {}]
  %s1 = inlined_call_operand.vmem [shape: bf16[16,36], index: 1, kind: input, shape index: {}]
  %s2 = inlined_call_operand.hbm [shape: bf16[36,512], index: 2, kind: input, shape index: {}]
  %s3 = inlined_call_operand.vmem [shape: f32[16,1], index: 3, kind: input, shape index: {}]
  %s4 = inlined_call_operand.hbm [shape: f32[16,512], index: 4, kind: output, shape index: {}]
  %s5 = sld [smem:[#allocation0]]
  $region57: #{tpu_custom_call.1} parent=0
    _
  %s7 = ssub.s32 1, %s5
  %s8 = scalar_select 0, %s7, %s5
  $region1: #{tpu_custom_call.1} parent=0
    #allocation2 [shape = 'u8[512]{0}', space=smem, size = 0x200, scoped, tag = 'input window, operand 0, single buffered']
    #allocation3 [shape = 's32[2]{0}', space=sflag, size = 0x8, scoped, tag = 'scoped memory for tpu_custom_call.1']
    #allocation4 [shape = 's32[2]{0}', space=sflag, size = 0x8, scoped, tag = 'scoped memory for tpu_custom_call.1']
    #allocation5 [shape = 's32[2]{0}', space=sflag, size = 0x8, scoped, tag = 'scoped memory for tpu_custom_call.1']
    #allocation6 [shape = 'u8[40960]{0}', space=vmem, size = 0xa000, scoped, tag = 'input window, operand 2']
    #allocation7 [shape = 'u8[32768]{0}', space=vmem, size = 0x8000, scoped, tag = 'output window, operand 0']
    %9 = vsyncpa [#allocation5], 0
    %10 = vsyncpa [#allocation3], 0
    %s11 = scalar_lea.sflag [#allocation3], 1
    %12 = vsyncpa %s11, 0
    %13 = vsyncpa [#allocation4], 0
    %s14 = scalar_lea.sflag [#allocation4], 1
    %15 = vsyncpa %s14, 0
    loop: start=0, step=1, limit=4
    $region2: #{tpu_custom_call.1} parent=1 // loop_pre_header
      _
    $region3: #{tpu_custom_call.1} parent=1 // loop_header
      %s17 = sphi 0, %s21
      %p18 = scmp.ge.s32.totalorder %s17, 4
      %s25 = sphi 0, %s25
      %s27 = sphi 0, %s25
      %s28 = sphi 0, %s27
      %s42 = sphi 0, %s28
      %s46 = sphi 0, %s46
      %s48 = sphi 0, %s46
      %s49 = sphi 0, %s48
      %s63 = sphi 0, %s49
      %s69 = sphi 0, %s71
      %s72 = sphi 0, %s69
      %s73 = sphi 0, %s72
      %s89 = sphi 0, %s73
      %s93 = sphi 0, %s93
      %s95 = sphi 0, %s93
      %s96 = sphi 0, %s95
      %s110 = sphi 0, %s96
      %s116 = sphi 0, %s118
      %s119 = sphi 0, %s116
      %s120 = sphi 0, %s119
      %s136 = sphi 0, %s120
    $region4: #{tpu_custom_call.1} parent=1 // loop_header_branch
      %20 = sbr.rel (%p18) target = $region8
    $region5: #{tpu_custom_call.1} parent=1 // loop_body
      %s22 = ssub.s32 %s17, 1
      %s23 = ssub.s32 %s17, 2
      %s24 = sadd.s32 %s17, 1
      %s26 = sadd.s32 %s25, 1
      %p29 = scmp.eq.s32.totalorder %s17, 1
      %p30 = scmp.ne.s32.totalorder %s25, %s27
      %p31 = scmp.eq.s32.totalorder %s17, 0
      %p32 = por %p30, %p31
      %p33 = scmp.ne.s32.totalorder %s25, %s27
      %p34 = scmp.eq.s32.totalorder %s22, 1
      %p35 = por %p33, %p34
      %p36 = scmp.ne.s32.totalorder %s27, %s28
      %p37 = scmp.eq.s32.totalorder %s22, 0
      %p38 = por %p36, %p37
      %p39 = scmp.ne.s32.totalorder %s27, %s28
      %p40 = scmp.eq.s32.totalorder %s23, 1
      %p41 = por %p39, %p40
      %p43 = scmp.ne.s32.totalorder %s28, %s42
      %p44 = scmp.eq.s32.totalorder %s23, 0
      %p45 = por %p43, %p44
      %s47 = sadd.s32 %s46, 1
      %p50 = scmp.eq.s32.totalorder %s17, 1
      %p51 = scmp.ne.s32.totalorder %s46, %s48
      %p52 = scmp.eq.s32.totalorder %s17, 0
      %p53 = por %p51, %p52
      %p54 = scmp.ne.s32.totalorder %s46, %s48
      %p55 = scmp.eq.s32.totalorder %s22, 1
      %p56 = por %p54, %p55
      %p57 = scmp.ne.s32.totalorder %s48, %s49
      %p58 = scmp.eq.s32.totalorder %s22, 0
      %p59 = por %p57, %p58
      %p60 = scmp.ne.s32.totalorder %s48, %s49
      %p61 = scmp.eq.s32.totalorder %s23, 1
      %p62 = por %p60, %p61
      %p64 = scmp.ne.s32.totalorder %s49, %s63
      %p65 = scmp.eq.s32.totalorder %s23, 0
      %p66 = por %p64, %p65
      %s67 = ssub.s32 %s17, %s24
      %p68 = scmp.eq.s32.totalorder %s67, 0
      %s70 = sadd.s32 %s69, 1
      %s71 = scalar_select %p68, %s69, %s70
      %p74 = pneg %p68
      %p75 = scmp.eq.s32.totalorder %s17, 1
      %p76 = por %p74, %p75
      %p77 = scmp.ne.s32.totalorder %s69, %s72
      %p78 = scmp.eq.s32.totalorder %s17, 0
      %p79 = por %p77, %p78
      %p80 = scmp.ne.s32.totalorder %s69, %s72
      %p81 = scmp.eq.s32.totalorder %s22, 1
      %p82 = por %p80, %p81
      %p83 = scmp.ne.s32.totalorder %s72, %s73
      %p84 = scmp.eq.s32.totalorder %s22, 0
      %p85 = por %p83, %p84
      %p86 = scmp.ne.s32.totalorder %s72, %s73
      %p87 = scmp.eq.s32.totalorder %s23, 1
      %p88 = por %p86, %p87
      %p90 = scmp.ne.s32.totalorder %s73, %s89
      %p91 = scmp.eq.s32.totalorder %s23, 0
      %p92 = por %p90, %p91
      %s94 = sadd.s32 %s93, 1
      %p97 = scmp.eq.s32.totalorder %s17, 1
      %p98 = scmp.ne.s32.totalorder %s93, %s95
      %p99 = scmp.eq.s32.totalorder %s17, 0
      %p100 = por %p98, %p99
      %p101 = scmp.ne.s32.totalorder %s93, %s95
      %p102 = scmp.eq.s32.totalorder %s22, 1
      %p103 = por %p101, %p102
      %p104 = scmp.ne.s32.totalorder %s95, %s96
      %p105 = scmp.eq.s32.totalorder %s22, 0
      %p106 = por %p104, %p105
      %p107 = scmp.ne.s32.totalorder %s95, %s96
      %p108 = scmp.eq.s32.totalorder %s23, 1
      %p109 = por %p107, %p108
      %p111 = scmp.ne.s32.totalorder %s96, %s110
      %p112 = scmp.eq.s32.totalorder %s23, 0
      %p113 = por %p111, %p112
      %s114 = ssub.s32 %s17, %s24
      %p115 = scmp.eq.s32.totalorder %s114, 0
      %s117 = sadd.s32 %s116, 1
      %s118 = scalar_select %p115, %s116, %s117
      %p121 = pneg %p115
      %p122 = scmp.eq.s32.totalorder %s17, 1
      %p123 = por %p121, %p122
      %p124 = scmp.ne.s32.totalorder %s116, %s119
      %p125 = scmp.eq.s32.totalorder %s17, 0
      %p126 = por %p124, %p125
      %p127 = scmp.ne.s32.totalorder %s116, %s119
      %p128 = scmp.eq.s32.totalorder %s22, 1
      %p129 = por %p127, %p128
      %p130 = scmp.ne.s32.totalorder %s119, %s120
      %p131 = scmp.eq.s32.totalorder %s22, 0
      %p132 = por %p130, %p131
      %p133 = scmp.ne.s32.totalorder %s119, %s120
      %p134 = scmp.eq.s32.totalorder %s23, 1
      %p135 = por %p133, %p134
      %p137 = scmp.ne.s32.totalorder %s120, %s136
      %p138 = scmp.eq.s32.totalorder %s23, 0
      %p139 = por %p137, %p138
      %p140 = scmp.le.s32.totalorder 1, %s17
      %p141 = scmp.lt.s32.totalorder %s17, 3
      %p142 = pnand %p140, %p141
      %p143 = pneg %p142
      // Predicated region
      $region9: #{tpu_custom_call.1} parent=5 // pred_check
        _
      $region10: #{tpu_custom_call.1} parent=5 // pred_check_branch
        %145 = sbr.rel (%p142) target = $region12
      $region11: #{tpu_custom_call.1} parent=5 // pred_region
        %s146 = ssub.s32 %s17, 1
        // Predicated region
        $region13: #{tpu_custom_call.1} parent=11 // pred_check
          %p147 = pneg %p38
        $region14: #{tpu_custom_call.1} parent=11 // pred_check_branch
          %149 = sbr.rel (%p147) target = $region16
        $region15: #{tpu_custom_call.1} parent=11 // pred_region
          %151 = vsyncadd [#allocation5], 0
          %s153 = sshll.u32 %s0, 4
          %s154 = int_to_ptr.vmem [resolvable:$true] %s153
          %156 = dma.vmem_to_smem %s154, 16, [#allocation2], [#allocation5]
        $region16: #{tpu_custom_call.1} parent=11 // pred_fallthru
          _
        // Predicated region
        $region17: #{tpu_custom_call.1} parent=11 // pred_check
          %p157 = pneg %p59
        $region18: #{tpu_custom_call.1} parent=11 // pred_check_branch
          %159 = sbr.rel (%p157) target = $region20
        $region19: #{tpu_custom_call.1} parent=11 // pred_region
          _
        $region20: #{tpu_custom_call.1} parent=11 // pred_fallthru
          _
        // Predicated region
        $region21: #{tpu_custom_call.1} parent=11 // pred_check
          %p160 = pneg %p106
        $region22: #{tpu_custom_call.1} parent=11 // pred_check_branch
          %162 = sbr.rel (%p160) target = $region24
        $region23: #{tpu_custom_call.1} parent=11 // pred_region
          _
        $region24: #{tpu_custom_call.1} parent=11 // pred_fallthru
          _
      $region12: #{tpu_custom_call.1} parent=5 // pred_fallthru
        _
      %p163 = scmp.lt.s32.totalorder %s17, 2
      // Predicated region
      $region25: #{tpu_custom_call.1} parent=5 // pred_check
        %p164 = pneg %p163
      $region26: #{tpu_custom_call.1} parent=5 // pred_check_branch
        %166 = sbr.rel (%p164) target = $region28
      $region27: #{tpu_custom_call.1} parent=5 // pred_region
        // Predicated region
        $region29: #{tpu_custom_call.1} parent=27 // pred_check
          %p167 = pneg %p79
        $region30: #{tpu_custom_call.1} parent=27 // pred_check_branch
          %169 = sbr.rel (%p167) target = $region32
        $region31: #{tpu_custom_call.1} parent=27 // pred_region
          %s170 = sand.u32 %s69, 1
          %s171 = scalar_lea.sflag [#allocation3], %s170
          %s172 = sand.u32 %s69, 1
          %s173 = smul.addr %s172, 40
          %s174 = scalar_lea.vmem [#allocation6], %s173
          %s175 = smul.u32 2, %s17
          %177 = vsyncadd %s171, 0
          %s178 = smul.addr %s175, 4
          %s179 = scalar_lea.hbm %s2, %s178
          %s180 = sshll.u32 %s179, 4
          %s181 = int_to_ptr.hbm [resolvable:$true] %s180
          %s182 = sshll.u32 %s174, 4
          %s183 = int_to_ptr.vmem [resolvable:$true] %s182
          %188 = dma.hbm_to_vmem [thread:$0]  %s181, 640, %s183, %s171, 256, 128, 8
        $region32: #{tpu_custom_call.1} parent=27 // pred_fallthru
          _
      $region28: #{tpu_custom_call.1} parent=5 // pred_fallthru
        _
      %p189 = scmp.le.s32.totalorder 1, %s17
      %p190 = scmp.lt.s32.totalorder %s17, 3
      %p191 = pnand %p189, %p190
      %p192 = pneg %p191
      // Predicated region
      $region33: #{tpu_custom_call.1} parent=5 // pred_check
        _
      $region34: #{tpu_custom_call.1} parent=5 // pred_check_branch
        %194 = sbr.rel (%p191) target = $region36
      $region35: #{tpu_custom_call.1} parent=5 // pred_region
        %s195 = ssub.s32 %s17, 1
        // Predicated region
        $region37: #{tpu_custom_call.1} parent=35 // pred_check
          %p196 = pneg %p38
        $region38: #{tpu_custom_call.1} parent=35 // pred_check_branch
          %198 = sbr.rel (%p196) target = $region40
        $region39: #{tpu_custom_call.1} parent=35 // pred_region
          %200 = dma.done [#allocation5], 16
        $region40: #{tpu_custom_call.1} parent=35 // pred_fallthru
          _
        %s201 = sand.u32 %s72, 1
        %s202 = scalar_lea.sflag [#allocation3], %s201
        %s203 = sand.u32 %s72, 1
        %s204 = smul.addr %s203, 40
        %s205 = scalar_lea.vmem [#allocation6], %s204
        // Predicated region
        $region41: #{tpu_custom_call.1} parent=35 // pred_check
          %p206 = pneg %p85
        $region42: #{tpu_custom_call.1} parent=35 // pred_check_branch
          %208 = sbr.rel (%p206) target = $region44
        $region43: #{tpu_custom_call.1} parent=35 // pred_region
          %210 = dma.done %s202, 640
        $region44: #{tpu_custom_call.1} parent=35 // pred_fallthru
          _
        %211 = sfence
        %p212 = pneg %p38
        %p213 = pneg %p35
        %p214 = pneg %p59
        %p215 = pneg %p56
        %s216 = sand.u32 %s72, 1
        %s217 = scalar_lea.sflag [#allocation3], %s216
        %s218 = sand.u32 %s72, 1
        %s219 = smul.addr %s218, 40
        %s220 = scalar_lea.vmem [#allocation6], %s219
        %p221 = pneg %p85
        %p222 = pneg %p82
        %p223 = pneg %p106
        %p224 = pneg %p103
        %p225 = pneg %p132
        %p226 = pneg %p129
        %s227 = sand.u32 %s119, 1
        %s228 = scalar_lea.sflag [#allocation4], %s227
        %s229 = sand.u32 %s119, 1
        %s230 = smul.addr %s229, 32
        %s231 = scalar_lea.vmem [#allocation7], %s230
        %s232 = smul.u32 2, %s22
        %s233 = smul.u32 2, %s22
        %s235 = sld [smem:[#allocation2]]
        %s236 = sld [smem:[#allocation2 + $0x1]]
        %s237 = sld [smem:[#allocation2 + $0x2]]
        %v238 = vld [vmem:[%s1] sm:$0xf]
        %v239 = vld [vmem:[%s1 + $0x4] sm:$0xf]
        %v240 = vld [vmem:[%s205] sm:$0xff]
        %v241 = vld [vmem:[%s205 + $0x8] sm:$0xff]
        %v242 = vld [vmem:[%s205 + $0x10] sm:$0xff]
        %v243 = vld [vmem:[%s205 + $0x18] sm:$0xff]
        %v244 = vld [vmem:[%s205 + $0x20] sm:$0x33]
        %v247 = vunpack.c.l.b16 %v238
        %v248 = vunpack.c.l.b16 %v239
        %v249 = vpack.c.b16 %v248, %v247
        %v255 = vunpack.c.l.b16 %v240
        %v256 = vunpack.c.h.b16 %v240
        %v257 = vunpack.c.l.b16 %v241
        %v258 = vunpack.c.h.b16 %v241
        %v259 = vunpack.c.l.b16 %v242
        %v260 = vunpack.c.h.b16 %v242
        %v261 = vunpack.c.l.b16 %v243
        %v262 = vunpack.c.h.b16 %v243
        %v263 = vunpack.c.l.b16 %v244
        %v264 = vunpack.c.h.b16 %v244
        %v265 = vpack.c.b16 %v257, %v255
        %v266 = vpack.c.b16 %v258, %v256
        %v267 = vpack.c.b16 %v261, %v259
        %v268 = vpack.c.b16 %v262, %v260
        %v269 = vpack.c.b16 %v263, %v263
        %v270 = vpack.c.b16 %v264, %v264
        %vm275 = vcmask 293888
        %v277 = vsel %vm275, %v249, 0
        %vm279 = vcmask 1041408
        %v281 = vsel %vm279, %v269, 0
        %v284 = vsel %vm279, %v270, 0
        %286 = vmatpush.bf16.msra.mxu0 0
        %287 = vmatpush.bf16.msra.mxu0 0
        %288 = vmatpush.bf16.msra.mxu0 0
        %289 = vmatpush.bf16.msra.mxu0 0
        %290 = vmatpush.bf16.msra.mxu0 0
        %291 = vmatpush.bf16.msra.mxu0 %v281
        %292 = vmatpush.bf16.msra.mxu0 %v267
        %293 = vmatpush.bf16.msra.mxu0 %v265
        %294 = vmatmul.bf16.gmra.mxu0 %v277
        %v295 = vpop.f32.mrf.mxu0
        %v296 = vadd.f32 0.0, %v295
        %v297 = vpop.f32.mrf.mxu0
        %v298 = vadd.f32 0.0, %v297
        %299 = vdwg.mxu0
        %300 = vmatpush.bf16.msra.mxu0 0
        %301 = vmatpush.bf16.msra.mxu0 0
        %302 = vmatpush.bf16.msra.mxu0 0
        %303 = vmatpush.bf16.msra.mxu0 0
        %304 = vmatpush.bf16.msra.mxu0 0
        %305 = vmatpush.bf16.msra.mxu0 %v284
        %306 = vmatpush.bf16.msra.mxu0 %v268
        %307 = vmatpush.bf16.msra.mxu0 %v266
        %308 = vmatmul.bf16.gmra.mxu0 %v277
        %v309 = vpop.f32.mrf.mxu0
        %v310 = vadd.f32 0.0, %v309
        %v311 = vpop.f32.mrf.mxu0
        %v312 = vadd.f32 0.0, %v311
        %313 = vdwg.mxu0
        %v314 = vstv %s235
        %v315 = vmul.f32 %v296, %v314
        %v316 = vmul.f32 %v310, %v314
        %v317 = vmul.f32 %v298, %v314
        %v318 = vmul.f32 %v312, %v314
        %v319 = vld [vmem:[%s3] sm:$0xff]
        %v320 = vld [vmem:[%s3 + $0x8] sm:$0xff]
        %322 = vset.pattern.permute.xlu0 0
        %323 = vperm.xlu0 %322, %v319
        %v324 = vpop.permute.xlu0 %323
        %327 = vset.pattern.permute.xlu0 0
        %328 = vperm.xlu0 %327, %v320
        %v329 = vpop.permute.xlu0 %328
        %v331 = vadd.f32 %v315, %v324
        %v332 = vadd.f32 %v316, %v324
        %v333 = vadd.f32 %v317, %v329
        %v334 = vadd.f32 %v318, %v329
        %v335 = vstv %s236
        %v336 = vmul.f32 %v331, %v335
        %v337 = vmul.f32 %v332, %v335
        %v338 = vmul.f32 %v333, %v335
        %v339 = vmul.f32 %v334, %v335
        %v340 = vround.ne.pseudo %v336
        %v341 = vround.ne.pseudo %v337
        %v342 = vround.ne.pseudo %v338
        %v343 = vround.ne.pseudo %v339
        %v344 = vmax.f32 %v340, -128.0
        %v345 = vmax.f32 %v341, -128.0
        %v346 = vmax.f32 %v342, -128.0
        %v347 = vmax.f32 %v343, -128.0
        %v348 = vmin.f32 %v344, 127.0
        %v349 = vmin.f32 %v345, 127.0
        %v350 = vmin.f32 %v346, 127.0
        %v351 = vmin.f32 %v347, 127.0
        %v352 = vstv %s237
        %v353 = vmul.f32 %v348, %v352
        %v354 = vmul.f32 %v349, %v352
        %v355 = vmul.f32 %v350, %v352
        %v356 = vmul.f32 %v351, %v352
        %357 = vst [vmem:[%s231] sm:$0xff] %v353
        %358 = vst [vmem:[%s231 + $0x8] sm:$0xff] %v354
        %359 = vst [vmem:[%s231 + $0x10] sm:$0xff] %v355
        %360 = vst [vmem:[%s231 + $0x18] sm:$0xff] %v356
        %s361 = sand.u32 %s119, 1
        %s362 = scalar_lea.sflag [#allocation4], %s361
        %s363 = sand.u32 %s119, 1
        %s364 = smul.addr %s363, 32
        %s365 = scalar_lea.vmem [#allocation7], %s364
        // Predicated region
        $region45: #{tpu_custom_call.1} parent=35 // pred_check
          %p366 = pneg %p129
        $region46: #{tpu_custom_call.1} parent=35 // pred_check_branch
          %368 = sbr.rel (%p366) target = $region48
        $region47: #{tpu_custom_call.1} parent=35 // pred_region
          %s369 = smul.u32 2, %s22
          %371 = vsyncadd %s362, 0
          %s372 = smul.addr %s369, 8
          %s373 = scalar_lea.hbm %s4, %s372
          %s374 = sshll.u32 %s365, 4
          %s375 = int_to_ptr.vmem [resolvable:$true] %s374
          %s376 = sshll.u32 %s373, 4
          %s377 = int_to_ptr.hbm [resolvable:$true] %s376
          %382 = dma.vmem_to_hbm [thread:$0]  %s375, 512, %s377, %s362, 256, 512, 16
        $region48: #{tpu_custom_call.1} parent=35 // pred_fallthru
          _
      $region36: #{tpu_custom_call.1} parent=5 // pred_fallthru
        _
      %p383 = scmp.le.s32.totalorder 2, %s17
      // Predicated region
      $region49: #{tpu_custom_call.1} parent=5 // pred_check
        %p384 = pneg %p383
      $region50: #{tpu_custom_call.1} parent=5 // pred_check_branch
        %386 = sbr.rel (%p384) target = $region52
      $region51: #{tpu_custom_call.1} parent=5 // pred_region
        %s387 = ssub.s32 %s17, 2
        // Predicated region
        $region53: #{tpu_custom_call.1} parent=51 // pred_check
          %p388 = pneg %p135
        $region54: #{tpu_custom_call.1} parent=51 // pred_check_branch
          %390 = sbr.rel (%p388) target = $region56
        $region55: #{tpu_custom_call.1} parent=51 // pred_region
          %s391 = sand.u32 %s120, 1
          %s392 = scalar_lea.sflag [#allocation4], %s391
          %s393 = sand.u32 %s120, 1
          %s394 = smul.addr %s393, 32
          %s395 = scalar_lea.vmem [#allocation7], %s394
          %397 = dma.done %s392, 512
        $region56: #{tpu_custom_call.1} parent=51 // pred_fallthru
          _
      $region52: #{tpu_custom_call.1} parent=5 // pred_fallthru
        _
    $region6: #{tpu_custom_call.1} parent=1 // loop_footer
      %s21 = sadd.s32 1, %s17
    $region7: #{tpu_custom_call.1} parent=1 // loop_footer_branch
      %16 = sbr.rel target = $region3
    $region8: #{tpu_custom_call.1} parent=1 // loop_exit
      _
    %398 = vsyncpa [#allocation3], 1
    %s399 = scalar_lea.sflag [#allocation3], 1
    %400 = vsyncpa %s399, 1
    %401 = vsyncpa [#allocation4], 1
    %s402 = scalar_lea.sflag [#allocation4], 1
    %403 = vsyncpa %s402, 1
    %404 = vsyncpa [#allocation5], 1
    %s405 = scalar_lea.sflag [#allocation5], 1
    %406 = vsyncpa %s405, 1

</llo_original>
